<compile_context>
chip_gen: v7x
topology: tpu7x:2x2x1
jax: 0.10.0
libtpu: 0.0.40
codegen_flags: <defaults>
</compile_context>

<pallas_src>
import functools

import jax
import jax.numpy as jnp
from jax.experimental import pallas as pl
from jax.experimental.pallas import tpu as pltpu


def _cdiv(a, b):
    return -(-a // b)


def _round_up(v, m):
    return _cdiv(v, m) * m


def _rnf_block_kernel(cur_ref, ov_ref, o_ref, *, filter_width, tw, d,
                      lane_dense):
    # cur_ref: (B, tw, D)       seq-tile j (rows j*tw .. j*tw+tw-1)
    # ov_ref : (B, ov_rows, D)  overlap rows starting at (j+1)*tw (clamped);
    #                           only the first fw-1 rows are consumed.
    # o_ref  : (B, tw, fw*D)    lane-dense window block j
    if lane_dense:
        # D is a multiple of 128: store each shifted slice straight into its
        # lane band of the output block -- no VMEM temporaries at all.
        for k in range(filter_width):
            o_ref[:, : tw - k, k * d:(k + 1) * d] = cur_ref[:, k:, :]
            if k > 0:
                o_ref[:, tw - k:, k * d:(k + 1) * d] = ov_ref[:, :k, :]
    else:
        # D is not a lane multiple: per-band stores would be lane-masked, so
        # build the lane-concatenated block in registers (one unmasked
        # full-block store), but without the row-slab temporary.
        parts = []
        for k in range(filter_width):
            if k == 0:
                parts.append(cur_ref[...])
            else:
                parts.append(jnp.concatenate(
                    [cur_ref[:, k:, :], ov_ref[:, :k, :]], axis=1))
        o_ref[...] = jnp.concatenate(parts, axis=-1)


def _rnf_small_kernel(x_ref, o_ref, *, filter_width, num_windows):
    # Tiny-W path: whole (tiny) input resident, single lane-dense store.
    xv = x_ref[...]
    parts = [xv[:, k:k + num_windows, :] for k in range(filter_width)]
    out = parts[0] if filter_width == 1 else jnp.concatenate(parts, axis=-1)
    o_ref[...] = out


def rnf_format(x, filter_width, *, target_block_bytes=4 << 20,
               vmem_budget_bytes=40 << 20):
    """Pallas equivalent of RNFFormatter(filter_width)(x)."""
    B, S, D = x.shape
    W = S - filter_width + 1
    if W <= 1:
        # degenerate case: torch returns x.unsqueeze(1)
        return x[:, None, :, :]
    if filter_width == 1:
        # windows are single rows; pure metadata change
        return x[:, :, None, :]

    fwD = filter_width * D
    itemsize = jnp.dtype(x.dtype).itemsize
    # native sublane tile for the dtype (packed dtypes pack along sublanes)
    sublane = {1: 32, 2: 16, 4: 8}.get(itemsize, 8)

    if W < sublane:
        # Tiny problem: one grid step, full-array blocks (block == full dims
        # satisfies the (8,128) rule), still a single lane-dense store.
        kernel = functools.partial(
            _rnf_small_kernel, filter_width=filter_width, num_windows=W)
        out_flat = pl.pallas_call(
            kernel,
            out_shape=jax.ShapeDtypeStruct((B, W, fwD), x.dtype),
            grid=(1,),
            in_specs=[pl.BlockSpec((B, S, D), lambda i: (0, 0, 0))],
            out_specs=pl.BlockSpec((B, W, fwD), lambda i: (0, 0, 0)),
            compiler_params=pltpu.CompilerParams(
                dimension_semantics=("arbitrary",)),
        )(x)
        return out_flat.reshape(B, W, filter_width, D)

    # ---- main tiled path ---------------------------------------------------
    ov_rows = _round_up(filter_width - 1, sublane)  # overlap block rows
    step = ov_rows          # tw must be a multiple of this (and of sublane)
    lane_dense = (D % 128 == 0)

    bytes_out_row = B * fwD * itemsize
    bytes_in_row = B * D * itemsize
    # double-buffered pipeline buffers + (non-lane-dense) register-concat temps
    per_row_vmem = 2 * (bytes_out_row + bytes_in_row)
    if not lane_dense:
        per_row_vmem += 2 * bytes_out_row
    fixed_vmem = 2 * B * ov_rows * D * itemsize

    tw_target = max(step, (target_block_bytes // max(1, bytes_out_row))
                    // step * step)
    tw_vmem = max(step, ((vmem_budget_bytes - fixed_vmem)
                         // max(1, per_row_vmem)) // step * step)
    tw_cap = _round_up(W, step)
    tw = min(tw_target, tw_vmem, tw_cap)

    nb = _cdiv(W, tw)
    # v7x megacore: prefer an even number of window blocks so the two
    # TensorCores get balanced work (best effort; near-neutral on v5e/v6e).
    if nb >= 3 and nb % 2 == 1:
        tw_even = max(step, _round_up(_cdiv(W, nb + 1), step))
        if _cdiv(W, tw_even) % 2 == 0:
            tw = tw_even
            nb = _cdiv(W, tw)

    nb_ov = _cdiv(S, ov_rows)   # overlap blocks covering the input rows
    tw_blocks = tw // ov_rows   # overlap-block units per window block

    vmem_need = fixed_vmem + tw * per_row_vmem
    vmem_limit = int(min(48 << 20, max(32 << 20, vmem_need * 5 // 4)))

    def _ov_index_map(j):
        # Overlap block starts at row (j+1)*tw; clamp to the last in-bounds
        # block (the clamp can only trigger when no valid window of block j
        # consumes rows >= (j+1)*tw -- see module docstring).
        return (0, jnp.minimum((j + 1) * tw_blocks, nb_ov - 1), 0)

    kernel = functools.partial(
        _rnf_block_kernel, filter_width=filter_width, tw=tw, d=D,
        lane_dense=lane_dense)
    out_flat = pl.pallas_call(
        kernel,
        out_shape=jax.ShapeDtypeStruct((B, W, fwD), x.dtype),
        grid=(nb,),
        in_specs=[
            # seq-tile j : rows [j*tw, (j+1)*tw)
            pl.BlockSpec((B, tw, D), lambda j: (0, j, 0)),
            # tiny overlap block starting at row (j+1)*tw (clamped)
            pl.BlockSpec((B, ov_rows, D), _ov_index_map),
        ],
        out_specs=pl.BlockSpec((B, tw, fwD), lambda j: (0, j, 0)),
        compiler_params=pltpu.CompilerParams(
            dimension_semantics=("parallel",),
            vmem_limit_bytes=vmem_limit),
    )(x, x)
    return out_flat.reshape(B, W, filter_width, D)


def rnf_format_ref(x, filter_width):
    """Pure-JAX reference mirroring the PyTorch loop."""
    B, S, D = x.shape
    W = S - filter_width + 1
    if W <= 1:
        return x[:, None, :, :]
    chunks = [x[:, i:i + filter_width, :][:, None, :, :] for i in range(W)]
    return jnp.concatenate(chunks, axis=1)


if __name__ == "__main__":
    key = jax.random.PRNGKey(0)
    filter_width = 3  # module's only "parameter"; no trainable weights exist

    # 1) main path, single block, non-lane-dense (D=32)
    B, S, D = 2, 30, 32
    x = jax.random.normal(key, (B, S, D), dtype=jnp.float32)
    out = jax.block_until_ready(rnf_format(x, filter_width))
    ref = rnf_format_ref(x, filter_width)
    assert out.shape == (B, S - filter_width + 1, filter_width, D), out.shape
    assert out.dtype == x.dtype
    assert jnp.array_equal(out, ref), "mismatch (main path, single block)"

    # 2) main path, many grid steps + overlap block consumed on the last step
    #    (tiny target_block_bytes forces tw=8)
    x2 = jax.random.normal(jax.random.PRNGKey(1), (2, 66, 32),
                           dtype=jnp.float32)
    out2 = jax.block_until_ready(
        rnf_format(x2, filter_width, target_block_bytes=1))
    assert jnp.array_equal(out2, rnf_format_ref(x2, filter_width)), \
        "mismatch (multi-block path)"

    # 3) lane-dense direct-store path (D=128), multi-block
    x3 = jax.random.normal(jax.random.PRNGKey(2), (2, 34, 128),
                           dtype=jnp.float32)
    out3 = jax.block_until_ready(
        rnf_format(x3, filter_width, target_block_bytes=1))
    assert jnp.array_equal(out3, rnf_format_ref(x3, filter_width)), \
        "mismatch (lane-dense path)"

    # 4) small-W path (2 <= W < sublane)
    xs = x[:, :8, :]
    outs = jax.block_until_ready(rnf_format(xs, filter_width))
    assert jnp.array_equal(outs, rnf_format_ref(xs, filter_width)), \
        "mismatch (small path)"

    # 5) degenerate branch (W <= 1): torch returns x.unsqueeze(1)
    xt = x[:, :filter_width, :]
    outt = jax.block_until_ready(rnf_format(xt, filter_width))
    assert jnp.array_equal(outt, xt[:, None, :, :])

    print("KERNEL_OK")
</pallas_src>

<mosaic_0001>
module attributes {stable_mosaic.version = 11 : i64} {
  func.func @_rnf_block_kernel(%arg0: i32, %arg1: memref<2x32x32xf32, #tpu.memory_space<vmem>>, %arg2: memref<2x8x32xf32, #tpu.memory_space<vmem>>, %arg3: memref<2x32x96xf32, #tpu.memory_space<vmem>>) attributes {dimension_semantics = [#tpu.dimension_semantics<parallel>], iteration_bounds = array<i64: 1>, scalar_prefetch = 0 : i64, scratch_operands = 0 : i64, tpu.core_type = #tpu.core_type<tc>, window_params = [{transform_indices = @transform_0, window_bounds = array<i64: 2, 32, 32>}, {transform_indices = @transform_1, window_bounds = array<i64: 2, 8, 32>}, {transform_indices = @transform_2, window_bounds = array<i64: 2, 32, 96>}]} {
    %c0 = arith.constant 0 : index
    %c0_0 = arith.constant 0 : index
    %c0_1 = arith.constant 0 : index
    %0 = vector.load %arg1[%c0, %c0_0, %c0_1] : memref<2x32x32xf32, #tpu.memory_space<vmem>>, vector<2x32x32xf32>
    %c0_2 = arith.constant 0 : index
    %c1 = arith.constant 1 : index
    %c0_3 = arith.constant 0 : index
    %1 = vector.load %arg1[%c0_2, %c1, %c0_3] : memref<2x32x32xf32, #tpu.memory_space<vmem>>, vector<2x31x32xf32>
    %c0_4 = arith.constant 0 : index
    %c0_5 = arith.constant 0 : index
    %c0_6 = arith.constant 0 : index
    %2 = vector.load %arg2[%c0_4, %c0_5, %c0_6] : memref<2x8x32xf32, #tpu.memory_space<vmem>>, vector<2x1x32xf32>
    %3 = tpu.concatenate %1, %2 in 1 : vector<2x31x32xf32>, vector<2x1x32xf32> -> vector<2x32x32xf32>
    %c0_7 = arith.constant 0 : index
    %c2 = arith.constant 2 : index
    %c0_8 = arith.constant 0 : index
    %4 = vector.load %arg1[%c0_7, %c2, %c0_8] : memref<2x32x32xf32, #tpu.memory_space<vmem>>, vector<2x30x32xf32>
    %c0_9 = arith.constant 0 : index
    %c0_10 = arith.constant 0 : index
    %c0_11 = arith.constant 0 : index
    %5 = vector.load %arg2[%c0_9, %c0_10, %c0_11] : memref<2x8x32xf32, #tpu.memory_space<vmem>>, vector<2x2x32xf32>
    %6 = tpu.concatenate %4, %5 in 1 : vector<2x30x32xf32>, vector<2x2x32xf32> -> vector<2x32x32xf32>
    %7 = tpu.concatenate %0, %3, %6 in 2 : vector<2x32x32xf32>, vector<2x32x32xf32>, vector<2x32x32xf32> -> vector<2x32x96xf32>
    %c0_12 = arith.constant 0 : index
    %c0_13 = arith.constant 0 : index
    %c0_14 = arith.constant 0 : index
    %8 = vector.load %arg3[%c0_12, %c0_13, %c0_14] : memref<2x32x96xf32, #tpu.memory_space<vmem>>, vector<2x32x96xf32>
    tpu.vector_store %arg3[%c0_12, %c0_13, %c0_14], %7 {strides = array<i32>} : memref<2x32x96xf32, #tpu.memory_space<vmem>>, vector<2x32x96xf32>,
    return
  }
  func.func @transform_0(%arg0: i32) -> (i32, i32, i32) {
    %c0_i32 = arith.constant 0 : i32
    %c0_i32_0 = arith.constant 0 : i32
    %c0_i32_1 = arith.constant 0 : i32
    return %c0_i32, %arg0, %c0_i32_0 : i32, i32, i32
  }
  func.func @transform_1(%arg0: i32) -> (i32, i32, i32) {
    %c1_i32 = arith.constant 1 : i32
    %0 = arith.addi %arg0, %c1_i32 : i32
    %c4_i32 = arith.constant 4 : i32
    %1 = arith.muli %0, %c4_i32 : i32
    %c3_i32 = arith.constant 3 : i32
    %2 = arith.minsi %1, %c3_i32 : i32
    %c0_i32 = arith.constant 0 : i32
    %c0_i32_0 = arith.constant 0 : i32
    %c0_i32_1 = arith.constant 0 : i32
    return %c0_i32, %2, %c0_i32_0 : i32, i32, i32
  }
  func.func @transform_2(%arg0: i32) -> (i32, i32, i32) {
    %c0_i32 = arith.constant 0 : i32
    %c0_i32_0 = arith.constant 0 : i32
    %c0_i32_1 = arith.constant 0 : i32
    return %c0_i32, %arg0, %c0_i32_0 : i32, i32, i32
  }
}

</mosaic_0001>

<llo_original>
// kernel: tpu_custom_call.1
$region0: #{tpu_custom_call.1}
  #allocation0 [shape = 'u32[]', space=smem, size = 0x4, offset = 0x4, fixed_abs, tag = 'smem constant byte address 0x4 - core index']
  #allocation1 [shape = 'u32[144,128]{1,0:T(1,128)}', space=vmem, size = 0x12000, scoped, tag = 'internal scratch']
  %s0 = inlined_call_operand.vmem [shape: f32[2,30,32], index: 0, kind: input, shape index: {}]
  %s1 = inlined_call_operand.vmem [shape: f32[2,30,32], index: 1, kind: input, shape index: {}]
  %s2 = inlined_call_operand.vmem [shape: f32[2,28,96], index: 2, kind: output, shape index: {}]
  %s3 = sld [smem:[#allocation0]]
  $region56: #{tpu_custom_call.1} parent=0
    _
  %s5 = ssub.s32 1, %s3
  %s6 = scalar_select 0, %s5, %s3
  $region1: #{tpu_custom_call.1} parent=0
    #allocation2 [shape = 'u8[8192]{0}', space=vmem, size = 0x2000, scoped, tag = 'input window, operand 1, single buffered']
    // Predicated region
    $region2: #{tpu_custom_call.1} parent=1 // pred_check
      _
    $region3: #{tpu_custom_call.1} parent=1 // pred_check_branch
      %8 = sbr.rel (0) target = $region5
    $region4: #{tpu_custom_call.1} parent=1 // pred_region
      _
    $region5: #{tpu_custom_call.1} parent=1 // pred_fallthru
      _
    // Predicated region
    $region6: #{tpu_custom_call.1} parent=1 // pred_check
      _
    $region7: #{tpu_custom_call.1} parent=1 // pred_check_branch
      %10 = sbr.rel (0) target = $region9
    $region8: #{tpu_custom_call.1} parent=1 // pred_region
      %s11 = sadd.s32 0, 1
      %s12 = smul.u32 %s11, 4
      %p13 = scmp.lt.s32.totalorder %s12, 3
      %s14 = scalar_select %p13, %s12, 3
      %s15 = smul.addr %s14, 8
      %s16 = scalar_lea.vmem %s1, %s15
      // Predicated region
      $region10: #{tpu_custom_call.1} parent=8 // pred_check
        _
      $region11: #{tpu_custom_call.1} parent=8 // pred_check_branch
        %18 = sbr.rel (0) target = $region13
      $region12: #{tpu_custom_call.1} parent=8 // pred_region
        // Predicated region
        $region14: #{tpu_custom_call.1} parent=12 // pred_check
          _
        $region15: #{tpu_custom_call.1} parent=12 // pred_check_branch
          %20 = sbr.rel (0) target = $region17
        $region16: #{tpu_custom_call.1} parent=12 // pred_region
          // Predicated region
          $region29: #{tpu_custom_call.1} parent=16 // pred_check
            _
          $region30: #{tpu_custom_call.1} parent=16 // pred_check_branch
            %37 = sbr.rel (0) target = $region32
          $region31: #{tpu_custom_call.1} parent=16 // pred_region
            loop: start=0, step=1, limit=1
            $region33: #{tpu_custom_call.1} parent=31 // loop_pre_header
              _
            $region34: #{tpu_custom_call.1} parent=31 // loop_header
              %s39 = sphi 0, %s43
              %p40 = scmp.ge.s32.totalorder %s39, 1
              %s44 = sphi %s16, %s16
              %s45 = sphi [#allocation2], [#allocation2]
            $region35: #{tpu_custom_call.1} parent=31 // loop_header_branch
              %42 = sbr.rel (%p40) target = $region39
            $region36: #{tpu_custom_call.1} parent=31 // loop_body
              %v46 = vld [vmem:[%s44] sm:$0xff]
              %47 = vst [vmem:[%s45] sm:$0xff] %v46
              %v48 = vld [vmem:[%s44 + $0x20] sm:$0xff]
              %49 = vst [vmem:[%s45 + $0x8] sm:$0xff] %v48
            $region37: #{tpu_custom_call.1} parent=31 // loop_footer
              %s43 = sadd.s32 1, %s39
            $region38: #{tpu_custom_call.1} parent=31 // loop_footer_branch
              %38 = sbr.rel target = $region34
            $region39: #{tpu_custom_call.1} parent=31 // loop_exit
              _
          $region32: #{tpu_custom_call.1} parent=16 // pred_fallthru
            _
          // Predicated region
          $region40: #{tpu_custom_call.1} parent=16 // pred_check
            _
          $region41: #{tpu_custom_call.1} parent=16 // pred_check_branch
            %51 = sbr.rel target = $region43
          $region42: #{tpu_custom_call.1} parent=16 // pred_region
            _
          $region43: #{tpu_custom_call.1} parent=16 // pred_fallthru
            _
        $region17: #{tpu_custom_call.1} parent=12 // pred_fallthru
          _
        // Predicated region
        $region18: #{tpu_custom_call.1} parent=12 // pred_check
          _
        $region19: #{tpu_custom_call.1} parent=12 // pred_check_branch
          %22 = sbr.rel target = $region21
        $region20: #{tpu_custom_call.1} parent=12 // pred_region
          loop: start=0, step=1, limit=1
          $region22: #{tpu_custom_call.1} parent=20 // loop_pre_header
            _
          $region23: #{tpu_custom_call.1} parent=20 // loop_header
            %s25 = sphi 0, %s29
            %p26 = scmp.ge.s32.totalorder %s25, 1
            %s30 = sphi %s16, %s16
            %s31 = sphi [#allocation2], [#allocation2]
          $region24: #{tpu_custom_call.1} parent=20 // loop_header_branch
            %28 = sbr.rel (%p26) target = $region28
          $region25: #{tpu_custom_call.1} parent=20 // loop_body
            %v32 = vld [vmem:[%s30] sm:$0xff]
            %33 = vst [vmem:[%s31] sm:$0xff] %v32
            %v34 = vld [vmem:[%s30 + $0x20] sm:$0xff]
            %35 = vst [vmem:[%s31 + $0x8] sm:$0xff] %v34
          $region26: #{tpu_custom_call.1} parent=20 // loop_footer
            %s29 = sadd.s32 1, %s25
          $region27: #{tpu_custom_call.1} parent=20 // loop_footer_branch
            %24 = sbr.rel target = $region23
          $region28: #{tpu_custom_call.1} parent=20 // loop_exit
            _
        $region21: #{tpu_custom_call.1} parent=12 // pred_fallthru
          _
      $region13: #{tpu_custom_call.1} parent=8 // pred_fallthru
        _
      %52 = vnop
    $region9: #{tpu_custom_call.1} parent=1 // pred_fallthru
      _
    // Predicated region
    $region44: #{tpu_custom_call.1} parent=1 // pred_check
      _
    $region45: #{tpu_custom_call.1} parent=1 // pred_check_branch
      %54 = sbr.rel (0) target = $region47
    $region46: #{tpu_custom_call.1} parent=1 // pred_region
      _
    $region47: #{tpu_custom_call.1} parent=1 // pred_fallthru
      _
    %s55 = sadd.s32 0, 1
    %s56 = smul.u32 %s55, 4
    %p57 = scmp.lt.s32.totalorder %s56, 3
    %s58 = scalar_select %p57, %s56, 3
    %v59 = vld [vmem:[%s0] sm:$0xff]
    %v60 = vld [vmem:[%s0 + $0x8] sm:$0xff]
    %v61 = vld [vmem:[%s0 + $0x10] sm:$0xff]
    %v62 = vld [vmem:[%s0 + $0x18] sm:$0xff]
    %v63 = vld [vmem:[%s0 + $0x20] sm:$0xff]
    %v64 = vld [vmem:[%s0 + $0x28] sm:$0xff]
    %v65 = vld [vmem:[%s0 + $0x30] sm:$0xff]
    %v66 = vld [vmem:[%s0 + $0x38] sm:$0xff]
    %v67 = vld [vmem:[%s0 + $0x1] sm:$0xff]
    %v68 = vld [vmem:[%s0 + $0x9] sm:$0xff]
    %v69 = vld [vmem:[%s0 + $0x11] sm:$0xff]
    %v70 = vld [vmem:[%s0 + $0x19] sm:$0x7f]
    %v71 = vld [vmem:[%s0 + $0x21] sm:$0xff]
    %v72 = vld [vmem:[%s0 + $0x29] sm:$0xff]
    %v73 = vld [vmem:[%s0 + $0x31] sm:$0xff]
    %v74 = vld [vmem:[%s0 + $0x39] sm:$0x7f]
    %v75 = vld [vmem:[#allocation2] sm:$0x1]
    %v76 = vld [vmem:[#allocation2 + $0x8] sm:$0x1]
    %v79 = vrot.slane %v75, 1
    %v80 = vrot.slane %v76, 1
    %vm83 = vcmask 1046528
    %v84 = vsel %vm83, %v70, %v79
    %v85 = vsel %vm83, %v74, %v80
    %v86 = vld [vmem:[%s0 + $0x2] sm:$0xff]
    %v87 = vld [vmem:[%s0 + $0xa] sm:$0xff]
    %v88 = vld [vmem:[%s0 + $0x12] sm:$0xff]
    %v89 = vld [vmem:[%s0 + $0x1a] sm:$0x3f]
    %v90 = vld [vmem:[%s0 + $0x22] sm:$0xff]
    %v91 = vld [vmem:[%s0 + $0x2a] sm:$0xff]
    %v92 = vld [vmem:[%s0 + $0x32] sm:$0xff]
    %v93 = vld [vmem:[%s0 + $0x3a] sm:$0x3f]
    %v94 = vld [vmem:[#allocation2] sm:$0x3]
    %v95 = vld [vmem:[#allocation2 + $0x8] sm:$0x3]
    %v98 = vrot.slane %v94, 2
    %v99 = vrot.slane %v95, 2
    %vm102 = vcmask 1045504
    %v103 = vsel %vm102, %v89, %v98
    %v104 = vsel %vm102, %v93, %v99
    %113 = vrot.lane.b32.xlu0 %v67, 32
    %v114 = vpop.permute.xlu0 %113
    %115 = vrot.lane.b32.xlu0 %v68, 32
    %v116 = vpop.permute.xlu0 %115
    %117 = vrot.lane.b32.xlu0 %v69, 32
    %v118 = vpop.permute.xlu0 %117
    %119 = vrot.lane.b32.xlu0 %v84, 32
    %v120 = vpop.permute.xlu0 %119
    %121 = vrot.lane.b32.xlu0 %v71, 32
    %v122 = vpop.permute.xlu0 %121
    %123 = vrot.lane.b32.xlu0 %v72, 32
    %v124 = vpop.permute.xlu0 %123
    %125 = vrot.lane.b32.xlu0 %v73, 32
    %v126 = vpop.permute.xlu0 %125
    %127 = vrot.lane.b32.xlu0 %v85, 32
    %v128 = vpop.permute.xlu0 %127
    %145 = vrot.lane.b32.xlu0 %v86, 64
    %v146 = vpop.permute.xlu0 %145
    %147 = vrot.lane.b32.xlu0 %v87, 64
    %v148 = vpop.permute.xlu0 %147
    %149 = vrot.lane.b32.xlu0 %v88, 64
    %v150 = vpop.permute.xlu0 %149
    %151 = vrot.lane.b32.xlu0 %v103, 64
    %v152 = vpop.permute.xlu0 %151
    %153 = vrot.lane.b32.xlu0 %v90, 64
    %v154 = vpop.permute.xlu0 %153
    %155 = vrot.lane.b32.xlu0 %v91, 64
    %v156 = vpop.permute.xlu0 %155
    %157 = vrot.lane.b32.xlu0 %v92, 64
    %v158 = vpop.permute.xlu0 %157
    %159 = vrot.lane.b32.xlu0 %v104, 64
    %v160 = vpop.permute.xlu0 %159
    %vm169 = vcmask 261120
    %v170 = vsel %vm169, %v59, %v114
    %v171 = vsel %vm169, %v60, %v116
    %v172 = vsel %vm169, %v61, %v118
    %v173 = vsel %vm169, %v62, %v120
    %v174 = vsel %vm169, %v63, %v122
    %v175 = vsel %vm169, %v64, %v124
    %v176 = vsel %vm169, %v65, %v126
    %v177 = vsel %vm169, %v66, %v128
    %vm178 = vcmask 523264
    %v179 = vsel %vm178, %v170, %v146
    %v180 = vsel %vm178, %v171, %v148
    %v181 = vsel %vm178, %v172, %v150
    %v182 = vsel %vm178, %v173, %v152
    %v183 = vsel %vm178, %v174, %v154
    %v184 = vsel %vm178, %v175, %v156
    %v185 = vsel %vm178, %v176, %v158
    %v186 = vsel %vm178, %v177, %v160
    %vm187 = vcmask 785408
    %188 = vst.msk [vmem:[%s2] sm:$0xff] %vm187, %v179
    %189 = vst.msk [vmem:[%s2 + $0x8] sm:$0xff] %vm187, %v180
    %190 = vst.msk [vmem:[%s2 + $0x10] sm:$0xff] %vm187, %v181
    %191 = vst.msk [vmem:[%s2 + $0x18] sm:$0xff] %vm187, %v182
    %192 = vst.msk [vmem:[%s2 + $0x20] sm:$0xff] %vm187, %v183
    %193 = vst.msk [vmem:[%s2 + $0x28] sm:$0xff] %vm187, %v184
    %194 = vst.msk [vmem:[%s2 + $0x30] sm:$0xff] %vm187, %v185
    %195 = vst.msk [vmem:[%s2 + $0x38] sm:$0xff] %vm187, %v186
    // Predicated region
    $region48: #{tpu_custom_call.1} parent=1 // pred_check
      _
    $region49: #{tpu_custom_call.1} parent=1 // pred_check_branch
      %197 = sbr.rel (0) target = $region51
    $region50: #{tpu_custom_call.1} parent=1 // pred_region
      _
    $region51: #{tpu_custom_call.1} parent=1 // pred_fallthru
      _
    // Predicated region
    $region52: #{tpu_custom_call.1} parent=1 // pred_check
      _
    $region53: #{tpu_custom_call.1} parent=1 // pred_check_branch
      %199 = sbr.rel (0) target = $region55
    $region54: #{tpu_custom_call.1} parent=1 // pred_region
      _
    $region55: #{tpu_custom_call.1} parent=1 // pred_fallthru
      _

</llo_original>
